<compile_context>
chip_gen: v7x
topology: tpu7x:2x2x1
jax: 0.10.0
libtpu: 0.0.40
codegen_flags: <defaults>
</compile_context>

<pallas_src>
import functools

import jax
import jax.numpy as jnp
from jax.experimental import pallas as pl
from jax.experimental.pallas import tpu as pltpu

_LANE = 128
_SUBLANE = 8
# (4096, 128) f32 tile = 2 MiB; 2 inputs x 2 buffers = 8 MiB resident + tiny accumulator.
# Fits every generation's scoped VMEM (v5e 16 MiB default, v6e/v7x 32 MiB).
_BLOCK_ROWS = 4096
_VMEM_LIMIT_BYTES = 32 * 1024 * 1024


def _elementwise_term(p, t):
    """Per-element (pred-target)^2 + (log(pred+1e-9)-log(target+1e-9))^2, torch semantics."""
    p = jnp.maximum(p, 1e-8)  # torch.clamp(pred, min=1e-8) is applied before BOTH terms
    diff = p - t
    log_diff = jnp.log(p + 1e-9) - jnp.log(t + 1e-9)
    return diff * diff + log_diff * log_diff


def _msle_kernel(pred_ref, target_ref, out_ref, *, rows, num_blocks, steps, needs_mask):
    c = pl.program_id(0)          # per-TensorCore axis (size 1 on 1-TC chips)
    i = pl.program_id(1)          # reduction axis

    @pl.when(i == 0)
    def _():
        # Output block index is constant in i -> stays VMEM-resident (one vreg) and
        # acts as this core's accumulator.
        out_ref[...] = jnp.zeros_like(out_ref)

    block_rows = pred_ref.shape[0]

    def _accumulate(p, t):
        term = _elementwise_term(p, t)                              # (block_rows, 128)
        # Fold sublane-tile groups with pure VPU vreg adds, then add the single
        # resulting (8,128) vreg into the resident accumulator (no full-block RMW).
        term = term.reshape(block_rows // _SUBLANE, _SUBLANE, _LANE)
        out_ref[...] += jnp.sum(term, axis=0)

    if needs_mask:
        # Only the last logical block (ragged rows) and any clamped overflow block can
        # contain invalid rows; gate the mask work to those steps so the steady-state
        # step reads pred/target directly with no iota/compare/select.
        block_idx = c * steps + i
        is_edge = block_idx >= num_blocks - 1

        @pl.when(jnp.logical_not(is_edge))
        def _():
            _accumulate(pred_ref[...].astype(jnp.float32),
                        target_ref[...].astype(jnp.float32))

        @pl.when(is_edge)
        def _():
            row_ids = jax.lax.broadcasted_iota(jnp.int32, (block_rows, _LANE), 0)
            valid = block_idx * block_rows + row_ids < rows
            one = jnp.float32(1.0)  # p = t = 1.0 makes both loss terms exactly zero
            _accumulate(jnp.where(valid, pred_ref[...].astype(jnp.float32), one),
                        jnp.where(valid, target_ref[...].astype(jnp.float32), one))
    else:
        _accumulate(pred_ref[...].astype(jnp.float32),
                    target_ref[...].astype(jnp.float32))


def _tensorcore_count():
    """Best-effort TensorCores per device (2 on v7x-class chips, else 1)."""
    try:
        dev = jax.devices()[0]
        for attr in ("num_cores", "core_count"):
            v = getattr(dev, attr, None)
            if isinstance(v, int) and v >= 1:
                return v
    except Exception:
        pass
    return 1


def _msle_partial_sum(pred2d, target2d):
    """Sum of per-element loss terms over a lane-dense (rows, 128) array pair."""
    rows = pred2d.shape[0]
    block_rows = min(_BLOCK_ROWS, (rows // _SUBLANE) * _SUBLANE)
    num_blocks = pl.cdiv(rows, block_rows)

    cores = _tensorcore_count()
    if cores >= 2 and num_blocks >= cores:
        # TODO(synk): profile on v7x to confirm CORE_PARALLEL actually shards the
        # leading axis across both TensorCores (plain "parallel" often does not).
        num_par = cores
        dim_sem = (pltpu.CORE_PARALLEL, pltpu.ARBITRARY)
    else:
        # Single-TensorCore chips (v5e/v6e): no dummy parallel axis work,
        # single accumulator, no clamped overflow re-fetch.
        num_par = 1
        dim_sem = ("arbitrary", "arbitrary")

    steps = pl.cdiv(num_blocks, num_par)
    ragged = (rows % block_rows) != 0
    has_overflow = num_par * steps > num_blocks

    def in_map(c, i):
        b = c * steps + i
        # Clamp keeps the DMA in bounds for overflow steps; the in-kernel row mask
        # (which uses the unclamped logical index) zeroes their contribution.
        return (jnp.minimum(b, num_blocks - 1), 0)

    kernel = functools.partial(
        _msle_kernel,
        rows=rows,
        num_blocks=num_blocks,
        steps=steps,
        needs_mask=bool(ragged or has_overflow),
    )

    partials = pl.pallas_call(
        kernel,
        out_shape=jax.ShapeDtypeStruct((num_par * _SUBLANE, _LANE), jnp.float32),
        grid=(num_par, steps),
        in_specs=[
            pl.BlockSpec((block_rows, _LANE), in_map),
            pl.BlockSpec((block_rows, _LANE), in_map),
        ],
        out_specs=pl.BlockSpec((_SUBLANE, _LANE), lambda c, i: (c, 0)),
        compiler_params=pltpu.CompilerParams(
            dimension_semantics=dim_sem,
            vmem_limit_bytes=_VMEM_LIMIT_BYTES,
        ),
    )(pred2d, target2d)

    # Final reduction of at most num_par vregs (8 KiB per core).
    return jnp.sum(partials)


def _msle_sum_small(pred, target):
    """Plain-jnp sum of loss terms for tiny pieces (<128-element tails / <8 rows)."""
    return jnp.sum(_elementwise_term(pred.astype(jnp.float32),
                                     target.astype(jnp.float32)))


def msle_loss(pred, target):
    """MSLELoss.forward(pred, target) -> scalar float32."""
    pred = jnp.asarray(pred).reshape(-1)
    target = jnp.asarray(target).reshape(-1)
    n = pred.shape[0]

    rows = n // _LANE
    if rows >= _SUBLANE:
        n_main = rows * _LANE
        if n_main < n:
            # Non-128-aligned flat size: no O(N) host-side pad -- the kernel gets the
            # lane-aligned prefix and the <128-element tail is summed with plain jnp.
            total = _msle_partial_sum(pred[:n_main].reshape(rows, _LANE),
                                      target[:n_main].reshape(rows, _LANE))
            total = total + _msle_sum_small(pred[n_main:], target[n_main:])
        else:
            total = _msle_partial_sum(pred.reshape(rows, _LANE),
                                      target.reshape(rows, _LANE))
    else:
        # Fewer than 8 full lane-rows (<1024 elements): not worth a kernel launch.
        total = _msle_sum_small(pred, target)

    # n == 0 yields 0/0 = NaN, matching torch's mean-of-empty behavior.
    return total / n


def _msle_loss_ref(pred, target):
    """Pure-JAX reference mirroring the PyTorch module exactly."""
    pred = jnp.maximum(pred.astype(jnp.float32), 1e-8)
    target = target.astype(jnp.float32)
    log_pred = jnp.log(pred + 1e-9)
    log_target = jnp.log(target + 1e-9)
    return jnp.mean((pred - target) ** 2) + jnp.mean((log_pred - log_target) ** 2)


if __name__ == "__main__":
    key = jax.random.PRNGKey(0)
    ks = jax.random.split(key, 8)

    # main case: small positive regression predictions/targets (2, 4, 16, 16)
    pred = jax.random.uniform(ks[0], (2, 4, 16, 16), jnp.float32, minval=0.0, maxval=5.0)
    target = jax.random.uniform(ks[1], (2, 4, 16, 16), jnp.float32, minval=0.0, maxval=5.0)
    loss = msle_loss(pred, target)
    jax.block_until_ready(loss)
    ref = _msle_loss_ref(pred, target)
    assert jnp.allclose(loss, ref, rtol=1e-4, atol=1e-5), (loss, ref)

    # non-128-aligned flat size with >= 8 full rows: exercises the gated ragged-row
    # mask (pl.when edge block) plus the plain-jnp <128-element tail.
    pred2 = jax.random.uniform(ks[2], (5, 7, 41), jnp.float32, minval=0.0, maxval=5.0)
    target2 = jax.random.uniform(ks[3], (5, 7, 41), jnp.float32, minval=0.0, maxval=5.0)
    loss2 = msle_loss(pred2, target2)
    jax.block_until_ready(loss2)
    ref2 = _msle_loss_ref(pred2, target2)
    assert jnp.allclose(loss2, ref2, rtol=1e-4, atol=1e-5), (loss2, ref2)

    # multi-block case with a ragged final block (1100 rows -> 1096-row blocks).
    pred3 = jax.random.uniform(ks[4], (1100, 128), jnp.float32, minval=0.0, maxval=5.0)
    target3 = jax.random.uniform(ks[5], (1100, 128), jnp.float32, minval=0.0, maxval=5.0)
    loss3 = msle_loss(pred3, target3)
    jax.block_until_ready(loss3)
    ref3 = _msle_loss_ref(pred3, target3)
    assert jnp.allclose(loss3, ref3, rtol=1e-4, atol=1e-5), (loss3, ref3)

    # tiny case (<1024 elements): pure-jnp fallback path.
    pred4 = jax.random.uniform(ks[6], (3, 5, 37), jnp.float32, minval=0.0, maxval=5.0)
    target4 = jax.random.uniform(ks[7], (3, 5, 37), jnp.float32, minval=0.0, maxval=5.0)
    loss4 = msle_loss(pred4, target4)
    jax.block_until_ready(loss4)
    ref4 = _msle_loss_ref(pred4, target4)
    assert jnp.allclose(loss4, ref4, rtol=1e-4, atol=1e-5), (loss4, ref4)

    print("KERNEL_OK")
</pallas_src>

<mosaic_0001>
module attributes {stable_mosaic.version = 11 : i64} {
  func.func @_msle_kernel(%arg0: i32, %arg1: i32, %arg2: memref<16x128xf32, #tpu.memory_space<vmem>>, %arg3: memref<16x128xf32, #tpu.memory_space<vmem>>, %arg4: memref<8x128xf32, #tpu.memory_space<vmem>>) attributes {dimension_semantics = [#tpu.dimension_semantics<arbitrary>, #tpu.dimension_semantics<arbitrary>], iteration_bounds = array<i64: 1, 1>, scalar_prefetch = 0 : i64, scratch_operands = 0 : i64, tpu.core_type = #tpu.core_type<tc>, window_params = [{transform_indices = @transform_0, window_bounds = array<i64: 16, 128>}, {transform_indices = @transform_1, window_bounds = array<i64: 16, 128>}, {transform_indices = @transform_2, window_bounds = array<i64: 8, 128>}]} {
    %c0_i32 = arith.constant 0 : i32
    %0 = arith.cmpi eq, %arg1, %c0_i32 : i32
    %1 = arith.extui %0 : i1 to i32
    %c0_i32_0 = arith.constant 0 : i32
    %2 = arith.cmpi ne, %1, %c0_i32_0 : i32
    scf.if %2 {
      %cst_11 = arith.constant 0.000000e+00 : f32
      %23 = vector.broadcast %cst_11 : f32 to vector<8x128xf32>
      %c0_12 = arith.constant 0 : index
      %c0_13 = arith.constant 0 : index
      %24 = vector.load %arg4[%c0_12, %c0_13] : memref<8x128xf32, #tpu.memory_space<vmem>>, vector<8x128xf32>
      tpu.vector_store %arg4[%c0_12, %c0_13], %23 {strides = array<i32>} : memref<8x128xf32, #tpu.memory_space<vmem>>, vector<8x128xf32>,
    } else {
    }
    %c0 = arith.constant 0 : index
    %c0_1 = arith.constant 0 : index
    %3 = vector.load %arg2[%c0, %c0_1] : memref<16x128xf32, #tpu.memory_space<vmem>>, vector<16x128xf32>
    %c0_2 = arith.constant 0 : index
    %c0_3 = arith.constant 0 : index
    %4 = vector.load %arg3[%c0_2, %c0_3] : memref<16x128xf32, #tpu.memory_space<vmem>>, vector<16x128xf32>
    %cst = arith.constant 9.99999993E-9 : f32
    %5 = vector.broadcast %cst : f32 to vector<16x128xf32>
    %6 = arith.maximumf %3, %5 : vector<16x128xf32>
    %7 = arith.subf %6, %4 : vector<16x128xf32>
    %cst_4 = arith.constant 9.99999971E-10 : f32
    %8 = vector.broadcast %cst_4 : f32 to vector<16x128xf32>
    %9 = arith.addf %6, %8 : vector<16x128xf32>
    %10 = math.log %9 : vector<16x128xf32>
    %cst_5 = arith.constant 9.99999971E-10 : f32
    %11 = vector.broadcast %cst_5 : f32 to vector<16x128xf32>
    %12 = arith.addf %4, %11 : vector<16x128xf32>
    %13 = math.log %12 : vector<16x128xf32>
    %14 = arith.subf %10, %13 : vector<16x128xf32>
    %15 = arith.mulf %7, %7 : vector<16x128xf32>
    %16 = arith.mulf %14, %14 : vector<16x128xf32>
    %17 = arith.addf %15, %16 : vector<16x128xf32>
    %18 = vector.shape_cast %17 : vector<16x128xf32> to vector<2x8x128xf32>
    %c0_6 = arith.constant 0 : index
    %c0_7 = arith.constant 0 : index
    %19 = vector.load %arg4[%c0_6, %c0_7] : memref<8x128xf32, #tpu.memory_space<vmem>>, vector<8x128xf32>
    %cst_8 = arith.constant dense<0.000000e+00> : vector<8x128xf32>
    %20 = vector.multi_reduction <add>, %18, %cst_8 [0] : vector<2x8x128xf32> to vector<8x128xf32>
    %21 = arith.addf %19, %20 : vector<8x128xf32>
    %c0_9 = arith.constant 0 : index
    %c0_10 = arith.constant 0 : index
    %22 = vector.load %arg4[%c0_9, %c0_10] : memref<8x128xf32, #tpu.memory_space<vmem>>, vector<8x128xf32>
    tpu.vector_store %arg4[%c0_9, %c0_10], %21 {strides = array<i32>} : memref<8x128xf32, #tpu.memory_space<vmem>>, vector<8x128xf32>,
    return
  }
  func.func @transform_0(%arg0: i32, %arg1: i32) -> (i32, i32) {
    %c1_i32 = arith.constant 1 : i32
    %0 = arith.muli %arg0, %c1_i32 : i32
    %1 = arith.addi %0, %arg1 : i32
    %c0_i32 = arith.constant 0 : i32
    %2 = arith.minsi %1, %c0_i32 : i32
    %c0_i32_0 = arith.constant 0 : i32
    %c0_i32_1 = arith.constant 0 : i32
    return %2, %c0_i32_0 : i32, i32
  }
  func.func @transform_1(%arg0: i32, %arg1: i32) -> (i32, i32) {
    %c1_i32 = arith.constant 1 : i32
    %0 = arith.muli %arg0, %c1_i32 : i32
    %1 = arith.addi %0, %arg1 : i32
    %c0_i32 = arith.constant 0 : i32
    %2 = arith.minsi %1, %c0_i32 : i32
    %c0_i32_0 = arith.constant 0 : i32
    %c0_i32_1 = arith.constant 0 : i32
    return %2, %c0_i32_0 : i32, i32
  }
  func.func @transform_2(%arg0: i32, %arg1: i32) -> (i32, i32) {
    %c0_i32 = arith.constant 0 : i32
    %c0_i32_0 = arith.constant 0 : i32
    return %arg0, %c0_i32 : i32, i32
  }
}

</mosaic_0001>

<llo_original>
// kernel: tpu_custom_call.1
$region0: #{tpu_custom_call.1}
  #allocation0 [shape = 'u32[]', space=smem, size = 0x4, offset = 0x4, fixed_abs, tag = 'smem constant byte address 0x4 - core index']
  #allocation1 [shape = 'u32[144,128]{1,0:T(1,128)}', space=vmem, size = 0x12000, scoped, tag = 'internal scratch']
  %s0 = inlined_call_operand.hbm [shape: f32[16,128], index: 0, kind: input, shape index: {}]
  %s1 = inlined_call_operand.hbm [shape: f32[16,128], index: 1, kind: input, shape index: {}]
  %s2 = inlined_call_operand.hbm [shape: f32[8,128], index: 2, kind: output, shape index: {}]
  %s3 = sld [smem:[#allocation0]]
  $region30: #{tpu_custom_call.1} parent=0
    _
  %s5 = ssub.s32 1, %s3
  %s6 = scalar_select 0, %s5, %s3
  $region1: #{tpu_custom_call.1} parent=0
    #allocation2 [shape = 'u8[8192]{0}', space=vmem, size = 0x2000, scoped, tag = 'input window, operand 0, single buffered']
    #allocation3 [shape = 's32[1]{0}', space=sflag, size = 0x4, scoped, tag = 'scoped memory for tpu_custom_call.1']
    #allocation4 [shape = 's32[1]{0}', space=sflag, size = 0x4, scoped, tag = 'scoped memory for tpu_custom_call.1']
    #allocation5 [shape = 'u8[8192]{0}', space=vmem, size = 0x2000, scoped, tag = 'input window, operand 1, single buffered']
    #allocation6 [shape = 's32[1]{0}', space=sflag, size = 0x4, scoped, tag = 'scoped memory for tpu_custom_call.1']
    #allocation7 [shape = 'u8[4096]{0}', space=vmem, size = 0x1000, scoped, tag = 'output window, operand 0, single buffered']
    %7 = vsyncpa [#allocation3], 0
    %8 = vsyncpa [#allocation6], 0
    %9 = vsyncpa [#allocation4], 0
    // Predicated region
    $region2: #{tpu_custom_call.1} parent=1 // pred_check
      _
    $region3: #{tpu_custom_call.1} parent=1 // pred_check_branch
      %11 = sbr.rel (0) target = $region5
    $region4: #{tpu_custom_call.1} parent=1 // pred_region
      %s12 = sadd.s32 0, 0
      %p13 = scmp.lt.s32.totalorder %s12, 0
      %s14 = scalar_select %p13, %s12, 0
      %s15 = smul.u32 2, %s14
      %s17 = ssub.s32 256, 256
      %18 = vsyncadd [#allocation3], %s17
      %s19 = smul.addr %s15, 128
      %s20 = scalar_lea.hbm %s0, %s19
      %s21 = sshll.u32 [#allocation2], 4
      %s22 = int_to_ptr.vmem [resolvable:$true] %s21
      %27 = dma.hbm_to_vmem [thread:$0]  %s20, 256, %s22, [#allocation3], 128, 128, 8
    $region5: #{tpu_custom_call.1} parent=1 // pred_fallthru
      _
    // Predicated region
    $region6: #{tpu_custom_call.1} parent=1 // pred_check
      _
    $region7: #{tpu_custom_call.1} parent=1 // pred_check_branch
      %29 = sbr.rel (0) target = $region9
    $region8: #{tpu_custom_call.1} parent=1 // pred_region
      %s30 = sadd.s32 0, 0
      %p31 = scmp.lt.s32.totalorder %s30, 0
      %s32 = scalar_select %p31, %s30, 0
      %s33 = smul.u32 2, %s32
      %s35 = ssub.s32 256, 256
      %36 = vsyncadd [#allocation6], %s35
      %s37 = smul.addr %s33, 128
      %s38 = scalar_lea.hbm %s1, %s37
      %s39 = sshll.u32 [#allocation5], 4
      %s40 = int_to_ptr.vmem [resolvable:$true] %s39
      %45 = dma.hbm_to_vmem [thread:$0]  %s38, 256, %s40, [#allocation6], 128, 128, 8
    $region9: #{tpu_custom_call.1} parent=1 // pred_fallthru
      _
    // Predicated region
    $region10: #{tpu_custom_call.1} parent=1 // pred_check
      _
    $region11: #{tpu_custom_call.1} parent=1 // pred_check_branch
      %47 = sbr.rel (0) target = $region13
    $region12: #{tpu_custom_call.1} parent=1 // pred_region
      %48 = dma.done [#allocation3], 256
    $region13: #{tpu_custom_call.1} parent=1 // pred_fallthru
      _
    // Predicated region
    $region14: #{tpu_custom_call.1} parent=1 // pred_check
      _
    $region15: #{tpu_custom_call.1} parent=1 // pred_check_branch
      %50 = sbr.rel (0) target = $region17
    $region16: #{tpu_custom_call.1} parent=1 // pred_region
      %51 = dma.done [#allocation6], 256
    $region17: #{tpu_custom_call.1} parent=1 // pred_fallthru
      _
    %s52 = sadd.s32 0, 0
    %p53 = scmp.lt.s32.totalorder %s52, 0
    %s54 = scalar_select %p53, %s52, 0
    %s55 = smul.u32 2, %s54
    %s56 = sadd.s32 0, 0
    %p57 = scmp.lt.s32.totalorder %s56, 0
    %s58 = scalar_select %p57, %s56, 0
    %s59 = smul.u32 2, %s58
    %p60 = scmp.eq.s32.totalorder 0, 0
    // Predicated region
    $region18: #{tpu_custom_call.1} parent=1 // pred_check
      %p61 = pneg %p60
    $region19: #{tpu_custom_call.1} parent=1 // pred_check_branch
      %63 = sbr.rel (%p61) target = $region21
    $region20: #{tpu_custom_call.1} parent=1 // pred_region
      %64 = vst [vmem:[#allocation7] sm:$0xff] 0.0
    $region21: #{tpu_custom_call.1} parent=1 // pred_fallthru
      _
    %v65 = vld [vmem:[#allocation2] sm:$0xff]
    %v66 = vld [vmem:[#allocation2 + $0x8] sm:$0xff]
    %v67 = vld [vmem:[#allocation5] sm:$0xff]
    %v68 = vld [vmem:[#allocation5 + $0x8] sm:$0xff]
    %v69 = vmax.f32 %v65, 1e-08
    %v70 = vmax.f32 %v66, 1e-08
    %v71 = vsub.f32 %v69, %v67
    %v72 = vsub.f32 %v70, %v68
    %v73 = vadd.f32 %v69, 1e-09
    %v74 = vadd.f32 %v70, 1e-09
    %v75 = vlog2.pop %v73
    %v76 = vmul.f32 %v75, 0.6931472
    %v77 = vlog2.pop %v74
    %v78 = vmul.f32 %v77, 0.6931472
    %v79 = vadd.f32 %v67, 1e-09
    %v80 = vadd.f32 %v68, 1e-09
    %v81 = vlog2.pop %v79
    %v82 = vmul.f32 %v81, 0.6931472
    %v83 = vlog2.pop %v80
    %v84 = vmul.f32 %v83, 0.6931472
    %v85 = vsub.f32 %v76, %v82
    %v86 = vsub.f32 %v78, %v84
    %v87 = vmul.f32 %v71, %v71
    %v88 = vmul.f32 %v72, %v72
    %v89 = vmul.f32 %v85, %v85
    %v90 = vmul.f32 %v86, %v86
    %v91 = vadd.f32 %v87, %v89
    %v92 = vadd.f32 %v88, %v90
    %v93 = vld [vmem:[#allocation7] sm:$0xff]
    %v94 = vadd.f32 %v91, %v92
    %v95 = vadd.f32 %v93, %v94
    %96 = vst [vmem:[#allocation7] sm:$0xff] %v95
    // Predicated region
    $region22: #{tpu_custom_call.1} parent=1 // pred_check
      _
    $region23: #{tpu_custom_call.1} parent=1 // pred_check_branch
      %98 = sbr.rel (0) target = $region25
    $region24: #{tpu_custom_call.1} parent=1 // pred_region
      %s100 = ssub.s32 128, 128
      %101 = vsyncadd [#allocation4], %s100
      %s103 = sshll.u32 [#allocation7], 4
      %s104 = int_to_ptr.vmem [resolvable:$true] %s103
      %106 = dma.vmem_to_hbm [thread:$0]  %s104, 128, %s2, [#allocation4]
    $region25: #{tpu_custom_call.1} parent=1 // pred_fallthru
      _
    // Predicated region
    $region26: #{tpu_custom_call.1} parent=1 // pred_check
      _
    $region27: #{tpu_custom_call.1} parent=1 // pred_check_branch
      %108 = sbr.rel (0) target = $region29
    $region28: #{tpu_custom_call.1} parent=1 // pred_region
      %109 = dma.done [#allocation4], 128
    $region29: #{tpu_custom_call.1} parent=1 // pred_fallthru
      _
    %110 = vsyncpa [#allocation3], 1
    %111 = vsyncpa [#allocation6], 1
    %112 = vsyncpa [#allocation4], 1

</llo_original>
